<compile_context>
chip_gen: v6e
topology: v6e:2x2x1
jax: 0.10.0
libtpu: 0.0.40
codegen_flags: <defaults>
</compile_context>

<pallas_src>
import functools

import jax
import jax.numpy as jnp
from jax import lax
from jax.experimental import pallas as pl
from jax.experimental.pallas import tpu as pltpu


def _hsic_zy_kernel(sqc_ref, sqr_ref, zi_ref, zj_ref, yi_ref, yj_ref, out_ref,
                    s1_acc, rz_acc, ry_acc, *, gamma, sigma, batch):
    j = pl.program_id(1)
    n_j = pl.num_programs(1)

    @pl.when(j == 0)
    def _init():
        s1_acc[...] = jnp.zeros_like(s1_acc)
        rz_acc[...] = jnp.zeros_like(rz_acc)
        ry_acc[...] = jnp.zeros_like(ry_acc)

    # ---- Gaussian Gram tile on z (one MXU matmul; norms are precomputed f32) --
    gz = lax.dot_general(zi_ref[...], zj_ref[...], (((1,), (1,)), ((), ())),
                         preferred_element_type=jnp.float32)            # (T, T)
    dist = jnp.maximum(sqc_ref[...] + sqr_ref[...] - 2.0 * gz, 0.0)
    k_z = jnp.exp(dist * (-0.5 / (sigma * sigma)))       # constant mul, EUP exp

    # ---- cosine-similarity Gram tile on y (y already normalized in wrapper) --
    k_y = lax.dot_general(yi_ref[...], yj_ref[...], (((1,), (1,)), ((), ())),
                          preferred_element_type=jnp.float32)           # (T, T)

    # ---- streaming (lane-axis) reductions, fused ------------------------------
    s1_acc[...] += jnp.sum(k_z * (k_z - gamma * k_y), axis=1, keepdims=True)
    rz_acc[...] += jnp.sum(k_z, axis=1, keepdims=True)
    ry_acc[...] += jnp.sum(k_y, axis=1, keepdims=True)

    # ---- finalize this row band's partial sums --------------------------------
    @pl.when(j == n_j - 1)
    def _finalize():
        inv_b = 1.0 / batch
        az = rz_acc[...] * inv_b      # row means == column means (symmetric kernels)
        ay = ry_acc[...] * inv_b
        p1 = jnp.sum(s1_acc[...])                 # sum Kz*(Kz - g*Ky) over this band
        p2 = jnp.sum(az * (az - gamma * ay))      # sum az*(az - g*ay) over this band
        p3 = jnp.sum(az)
        p4 = jnp.sum(ay)
        rid = lax.broadcasted_iota(jnp.int32, (8, 128), 0)
        out_ref[0] = (jnp.where(rid == 0, p1, 0.0)
                      + jnp.where(rid == 1, p2, 0.0)
                      + jnp.where(rid == 2, p3, 0.0)
                      + jnp.where(rid == 3, p4, 0.0))


def _round_up(x, m):
    return ((x + m - 1) // m) * m


def hsic_zy_loss(z, y, gamma=2.0, sigma=5.0, *, max_tile=256,
                 matmul_dtype=jnp.bfloat16, core_parallel=False):
    """HSIC(Z,Z) - gamma*HSIC(Z,Y), Gaussian z-kernel + cosine y-kernel, mode='biased'.

    matmul_dtype: MXU feed dtype (default bf16; pass jnp.float32 for the exact path).
    core_parallel: set True on v7x to shard row bands across the 2 TensorCores.
    """
    batch = z.shape[0]
    z2 = z.reshape(batch, -1)
    y2 = y.reshape(batch, -1)
    d = z2.shape[1]
    c = y2.shape[1]

    mm_dtype = jnp.dtype(matmul_dtype)
    d_pad = _round_up(d, 128)          # lane-dense feature dims (zeros are neutral)
    c_pad = _round_up(c, 128)

    # ---- tile selection: lane-dense and VMEM-budget aware (v7x: 64 MiB phys) --
    def _fits(t):
        need = (2 * 2 * t * (d_pad + c_pad) * mm_dtype.itemsize  # dbl-buffered z/y tiles
                + 8 * t * t * 4)                                 # ~f32 Gram intermediates
        return need <= 40 * 1024 * 1024

    if batch <= 128:
        tile = _round_up(batch, 8)
    else:
        tile = max_tile
        while tile > 128 and not _fits(tile):
            tile //= 2
        tile = max(tile, 128)
        if batch <= tile:
            tile = _round_up(batch, 128)     # single lane-dense row band
    b_pad = _round_up(batch, tile)
    n_tiles = b_pad // tile
    pad_b = b_pad - batch

    # ---- hoisted per-row work (done ONCE here, not n_tiles times in-kernel) ---
    z_f32 = z2.astype(jnp.float32)
    sq = jnp.sum(z_f32 * z_f32, axis=1)              # exact f32 ||z_i||^2
    # Padded rows get a huge squared norm so exp(-dist/(2 sigma^2)) underflows to
    # exactly 0 for the padded rows AND columns of Kz -> no in-kernel masking.
    sq = jnp.pad(sq, (0, pad_b), constant_values=1e20)
    sq_col = sq.reshape(b_pad, 1)
    sq_row = sq.reshape(1, b_pad)

    y_f32 = y2.astype(jnp.float32)
    y_nrm2 = jnp.sum(y_f32 * y_f32, axis=1, keepdims=True)
    y_n = y_f32 * lax.rsqrt(jnp.maximum(y_nrm2, 1e-12))   # cosine normalization, once

    # Cast the MXU feeds once in the wrapper (halves HBM/VMEM traffic for bf16);
    # padded y rows are zero -> Ky padded rows/cols are exactly 0.
    z_mm = jnp.pad(z2.astype(mm_dtype), ((0, pad_b), (0, d_pad - d)))
    y_mm = jnp.pad(y_n.astype(mm_dtype), ((0, pad_b), (0, c_pad - c)))

    kernel = functools.partial(_hsic_zy_kernel, gamma=float(gamma),
                               sigma=float(sigma), batch=batch)

    mm_b = mm_dtype.itemsize
    cost = pl.CostEstimate(
        flops=2 * b_pad * b_pad * (d_pad + c_pad) + 12 * b_pad * b_pad,
        transcendentals=b_pad * b_pad,
        # row tiles are DMA'd once per row band, column tiles n_tiles times
        bytes_accessed=((n_tiles + 1) * b_pad * (d_pad + c_pad) * mm_b
                        + 2 * (n_tiles + 1) * b_pad * 4
                        + n_tiles * 8 * 128 * 4))

    dims = ((pltpu.CORE_PARALLEL, pltpu.ARBITRARY) if core_parallel
            else ("parallel", "arbitrary"))

    partials = pl.pallas_call(
        kernel,
        out_shape=jax.ShapeDtypeStruct((n_tiles, 8, 128), jnp.float32),
        grid_spec=pltpu.PrefetchScalarGridSpec(
            num_scalar_prefetch=0,
            grid=(n_tiles, n_tiles),
            in_specs=[pl.BlockSpec((tile, 1), lambda i, j: (i, 0)),       # ||z_i||^2 rows
                      pl.BlockSpec((1, tile), lambda i, j: (0, j)),       # ||z_j||^2 cols
                      pl.BlockSpec((tile, d_pad), lambda i, j: (i, 0)),   # z row tile
                      pl.BlockSpec((tile, d_pad), lambda i, j: (j, 0)),   # z col tile
                      pl.BlockSpec((tile, c_pad), lambda i, j: (i, 0)),   # y_n row tile
                      pl.BlockSpec((tile, c_pad), lambda i, j: (j, 0))],  # y_n col tile
            out_specs=pl.BlockSpec((1, 8, 128), lambda i, j: (i, 0, 0)),
            scratch_shapes=[pltpu.VMEM((tile, 1), jnp.float32),
                            pltpu.VMEM((tile, 1), jnp.float32),
                            pltpu.VMEM((tile, 1), jnp.float32)]),
        compiler_params=pltpu.CompilerParams(
            dimension_semantics=dims,
            vmem_limit_bytes=48 * 1024 * 1024),
        cost_estimate=cost,
    )(sq_col, sq_row, z_mm, z_mm, y_mm, y_mm)

    # Tiny cross-tile combine (4 scalars per row band).
    p1 = jnp.sum(partials[:, 0, 0])   # sum Kz*(Kz - g*Ky)
    p2 = jnp.sum(partials[:, 1, 0])   # sum az*(az - g*ay)
    p3 = jnp.sum(partials[:, 2, 0])   # sum az
    p4 = jnp.sum(partials[:, 3, 0])   # sum ay
    g = float(gamma)
    inv_b = 1.0 / batch
    # loss = mean(Kz*(Kz-gKy)) - 2*mean(az*(az-g*ay)) + mean(az)*(mean(az)-g*mean(ay))
    loss = (p1 * inv_b * inv_b
            - 2.0 * p2 * inv_b
            + (p3 * p3 - g * p3 * p4) * inv_b * inv_b)
    return loss


def _hsic_zy_ref(z, y, gamma, sigma):
    """Pure-JAX reference (biased HSIC, Gaussian z-kernel, cosine y-kernel)."""
    b = z.shape[0]
    z = z.reshape(b, -1).astype(jnp.float32)
    y = y.reshape(b, -1).astype(jnp.float32)
    sq = jnp.sum(z * z, axis=1)
    d2 = jnp.maximum(sq[:, None] + sq[None, :] - 2.0 * (z @ z.T), 0.0)
    kz = jnp.exp(-d2 / (2.0 * sigma * sigma))
    yn = y / jnp.maximum(jnp.linalg.norm(y, axis=1, keepdims=True), 1e-12)
    ky = yn @ yn.T

    def hsic(kx, kyy):
        a = kx.mean(0)
        bb = kyy.mean(0)
        return jnp.mean(kx * kyy) - 2.0 * jnp.mean(a * bb) + jnp.mean(a) * jnp.mean(bb)

    return hsic(kz, kz) - gamma * hsic(kz, ky)


if __name__ == "__main__":
    key = jax.random.PRNGKey(0)
    kz_key, ky_key = jax.random.split(key)

    B, D, C = 8, 32, 10                       # batch, hidden features, classes
    z = jax.random.normal(kz_key, (B, D), dtype=jnp.float32)
    labels = jax.random.randint(ky_key, (B,), 0, C)
    y = jax.nn.one_hot(labels, C, dtype=jnp.float32)

    # Exact-path sanity check against the pure-JAX reference.
    ref = float(_hsic_zy_ref(z, y, 2.0, 5.0))
    exact = float(hsic_zy_loss(z, y, gamma=2.0, sigma=5.0, matmul_dtype=jnp.float32))
    assert abs(exact - ref) <= 1e-4 + 1e-3 * abs(ref), (exact, ref)

    # Default fast path (bf16 MXU feeds, f32 norms / exp / accumulators).
    loss = hsic_zy_loss(z, y, gamma=2.0, sigma=5.0)
    jax.block_until_ready(loss)
    print("KERNEL_OK")
</pallas_src>

<mosaic_0001>
module attributes {stable_mosaic.version = 11 : i64} {
  func.func @_hsic_zy_kernel(%arg0: i32, %arg1: i32, %arg2: memref<8x1xf32, #tpu.memory_space<vmem>>, %arg3: memref<1x8xf32, #tpu.memory_space<vmem>>, %arg4: memref<8x128xf32, #tpu.memory_space<vmem>>, %arg5: memref<8x128xf32, #tpu.memory_space<vmem>>, %arg6: memref<8x128xf32, #tpu.memory_space<vmem>>, %arg7: memref<8x128xf32, #tpu.memory_space<vmem>>, %arg8: memref<1x8x128xf32, #tpu.memory_space<vmem>>, %arg9: memref<8x1xf32, #tpu.memory_space<vmem>>, %arg10: memref<8x1xf32, #tpu.memory_space<vmem>>, %arg11: memref<8x1xf32, #tpu.memory_space<vmem>>) attributes {dimension_semantics = [#tpu.dimension_semantics<parallel>, #tpu.dimension_semantics<arbitrary>], iteration_bounds = array<i64: 1, 1>, scalar_prefetch = 0 : i64, scratch_operands = 3 : i64, tpu.core_type = #tpu.core_type<tc>, window_params = [{transform_indices = @transform_0, window_bounds = array<i64: 8, 1>}, {transform_indices = @transform_1, window_bounds = array<i64: 1, 8>}, {transform_indices = @transform_2, window_bounds = array<i64: 8, 128>}, {transform_indices = @transform_3, window_bounds = array<i64: 8, 128>}, {transform_indices = @transform_4, window_bounds = array<i64: 8, 128>}, {transform_indices = @transform_5, window_bounds = array<i64: 8, 128>}, {transform_indices = @transform_6, window_bounds = array<i64: 1, 8, 128>}]} {
    %c0_i32 = arith.constant 0 : i32
    %0 = arith.cmpi eq, %arg1, %c0_i32 : i32
    %1 = arith.extui %0 : i1 to i32
    %c0_i32_0 = arith.constant 0 : i32
    %2 = arith.cmpi ne, %1, %c0_i32_0 : i32
    scf.if %2 {
      %cst_34 = arith.constant 0.000000e+00 : f32
      %44 = vector.broadcast %cst_34 : f32 to vector<8x1xf32>
      %c0_35 = arith.constant 0 : index
      %c0_36 = arith.constant 0 : index
      %45 = vector.load %arg9[%c0_35, %c0_36] : memref<8x1xf32, #tpu.memory_space<vmem>>, vector<8x1xf32>
      tpu.vector_store %arg9[%c0_35, %c0_36], %44 {strides = array<i32>} : memref<8x1xf32, #tpu.memory_space<vmem>>, vector<8x1xf32>,
      %cst_37 = arith.constant 0.000000e+00 : f32
      %46 = vector.broadcast %cst_37 : f32 to vector<8x1xf32>
      %c0_38 = arith.constant 0 : index
      %c0_39 = arith.constant 0 : index
      %47 = vector.load %arg10[%c0_38, %c0_39] : memref<8x1xf32, #tpu.memory_space<vmem>>, vector<8x1xf32>
      tpu.vector_store %arg10[%c0_38, %c0_39], %46 {strides = array<i32>} : memref<8x1xf32, #tpu.memory_space<vmem>>, vector<8x1xf32>,
      %cst_40 = arith.constant 0.000000e+00 : f32
      %48 = vector.broadcast %cst_40 : f32 to vector<8x1xf32>
      %c0_41 = arith.constant 0 : index
      %c0_42 = arith.constant 0 : index
      %49 = vector.load %arg11[%c0_41, %c0_42] : memref<8x1xf32, #tpu.memory_space<vmem>>, vector<8x1xf32>
      tpu.vector_store %arg11[%c0_41, %c0_42], %48 {strides = array<i32>} : memref<8x1xf32, #tpu.memory_space<vmem>>, vector<8x1xf32>,
    } else {
    }
    %c0 = arith.constant 0 : index
    %c0_1 = arith.constant 0 : index
    %3 = vector.load %arg4[%c0, %c0_1] : memref<8x128xf32, #tpu.memory_space<vmem>>, vector<8x128xf32>
    %c0_2 = arith.constant 0 : index
    %c0_3 = arith.constant 0 : index
    %4 = vector.load %arg5[%c0_2, %c0_3] : memref<8x128xf32, #tpu.memory_space<vmem>>, vector<8x128xf32>
    %cst = arith.constant dense<0.000000e+00> : vector<8x8xf32>
    %5 = tpu.matmul %3, %4, %cst {dimension_numbers = #tpu.dot_dimension_numbers<[1], [1], [0], [0], [0, 0, 1, 0], [], []>} : vector<8x128xf32>, vector<8x128xf32>, vector<8x8xf32> -> vector<8x8xf32>
    %c0_4 = arith.constant 0 : index
    %c0_5 = arith.constant 0 : index
    %6 = vector.load %arg2[%c0_4, %c0_5] : memref<8x1xf32, #tpu.memory_space<vmem>>, vector<8x1xf32>
    %c0_6 = arith.constant 0 : index
    %c0_7 = arith.constant 0 : index
    %7 = vector.load %arg3[%c0_6, %c0_7] : memref<1x8xf32, #tpu.memory_space<vmem>>, vector<1x8xf32>
    %8 = vector.broadcast %6 : vector<8x1xf32> to vector<8x8xf32>
    %9 = vector.broadcast %7 : vector<1x8xf32> to vector<8x8xf32>
    %10 = arith.addf %8, %9 : vector<8x8xf32>
    %cst_8 = arith.constant 2.000000e+00 : f32
    %11 = vector.broadcast %cst_8 : f32 to vector<8x8xf32>
    %12 = arith.mulf %11, %5 : vector<8x8xf32>
    %13 = arith.subf %10, %12 : vector<8x8xf32>
    %cst_9 = arith.constant 0.000000e+00 : f32
    %14 = vector.broadcast %cst_9 : f32 to vector<8x8xf32>
    %15 = arith.maximumf %13, %14 : vector<8x8xf32>
    %cst_10 = arith.constant -2.000000e-02 : f32
    %16 = vector.broadcast %cst_10 : f32 to vector<8x8xf32>
    %17 = arith.mulf %15, %16 : vector<8x8xf32>
    %18 = math.exp %17 : vector<8x8xf32>
    %c0_11 = arith.constant 0 : index
    %c0_12 = arith.constant 0 : index
    %19 = vector.load %arg6[%c0_11, %c0_12] : memref<8x128xf32, #tpu.memory_space<vmem>>, vector<8x128xf32>
    %c0_13 = arith.constant 0 : index
    %c0_14 = arith.constant 0 : index
    %20 = vector.load %arg7[%c0_13, %c0_14] : memref<8x128xf32, #tpu.memory_space<vmem>>, vector<8x128xf32>
    %cst_15 = arith.constant dense<0.000000e+00> : vector<8x8xf32>
    %21 = tpu.matmul %19, %20, %cst_15 {dimension_numbers = #tpu.dot_dimension_numbers<[1], [1], [0], [0], [0, 0, 1, 0], [], []>} : vector<8x128xf32>, vector<8x128xf32>, vector<8x8xf32> -> vector<8x8xf32>
    %c0_16 = arith.constant 0 : index
    %c0_17 = arith.constant 0 : index
    %22 = vector.load %arg9[%c0_16, %c0_17] : memref<8x1xf32, #tpu.memory_space<vmem>>, vector<8x1xf32>
    %cst_18 = arith.constant 2.000000e+00 : f32
    %23 = vector.broadcast %cst_18 : f32 to vector<8x8xf32>
    %24 = arith.mulf %23, %21 : vector<8x8xf32>
    %25 = arith.subf %18, %24 : vector<8x8xf32>
    %26 = arith.mulf %18, %25 : vector<8x8xf32>
    %cst_19 = arith.constant dense<0.000000e+00> : vector<8xf32>
    %27 = vector.multi_reduction <add>, %26, %cst_19 [1] : vector<8x8xf32> to vector<8xf32>
    %28 = vector.shape_cast %27 : vector<8xf32> to vector<8x1xf32>
    %29 = arith.addf %22, %28 : vector<8x1xf32>
    %c0_20 = arith.constant 0 : index
    %c0_21 = arith.constant 0 : index
    %30 = vector.load %arg9[%c0_20, %c0_21] : memref<8x1xf32, #tpu.memory_space<vmem>>, vector<8x1xf32>
    tpu.vector_store %arg9[%c0_20, %c0_21], %29 {strides = array<i32>} : memref<8x1xf32, #tpu.memory_space<vmem>>, vector<8x1xf32>,
    %c0_22 = arith.constant 0 : index
    %c0_23 = arith.constant 0 : index
    %31 = vector.load %arg10[%c0_22, %c0_23] : memref<8x1xf32, #tpu.memory_space<vmem>>, vector<8x1xf32>
    %cst_24 = arith.constant dense<0.000000e+00> : vector<8xf32>
    %32 = vector.multi_reduction <add>, %18, %cst_24 [1] : vector<8x8xf32> to vector<8xf32>
    %33 = vector.shape_cast %32 : vector<8xf32> to vector<8x1xf32>
    %34 = arith.addf %31, %33 : vector<8x1xf32>
    %c0_25 = arith.constant 0 : index
    %c0_26 = arith.constant 0 : index
    %35 = vector.load %arg10[%c0_25, %c0_26] : memref<8x1xf32, #tpu.memory_space<vmem>>, vector<8x1xf32>
    tpu.vector_store %arg10[%c0_25, %c0_26], %34 {strides = array<i32>} : memref<8x1xf32, #tpu.memory_space<vmem>>, vector<8x1xf32>,
    %c0_27 = arith.constant 0 : index
    %c0_28 = arith.constant 0 : index
    %36 = vector.load %arg11[%c0_27, %c0_28] : memref<8x1xf32, #tpu.memory_space<vmem>>, vector<8x1xf32>
    %cst_29 = arith.constant dense<0.000000e+00> : vector<8xf32>
    %37 = vector.multi_reduction <add>, %21, %cst_29 [1] : vector<8x8xf32> to vector<8xf32>
    %38 = vector.shape_cast %37 : vector<8xf32> to vector<8x1xf32>
    %39 = arith.addf %36, %38 : vector<8x1xf32>
    %c0_30 = arith.constant 0 : index
    %c0_31 = arith.constant 0 : index
    %40 = vector.load %arg11[%c0_30, %c0_31] : memref<8x1xf32, #tpu.memory_space<vmem>>, vector<8x1xf32>
    tpu.vector_store %arg11[%c0_30, %c0_31], %39 {strides = array<i32>} : memref<8x1xf32, #tpu.memory_space<vmem>>, vector<8x1xf32>,
    %c0_i32_32 = arith.constant 0 : i32
    %41 = arith.cmpi eq, %arg1, %c0_i32_32 : i32
    %42 = arith.extui %41 : i1 to i32
    %c0_i32_33 = arith.constant 0 : i32
    %43 = arith.cmpi ne, %42, %c0_i32_33 : i32
    scf.if %43 {
      %c0_34 = arith.constant 0 : index
      %c0_35 = arith.constant 0 : index
      %44 = vector.load %arg10[%c0_34, %c0_35] : memref<8x1xf32, #tpu.memory_space<vmem>>, vector<8x1xf32>
      %cst_36 = arith.constant 1.250000e-01 : f32
      %45 = vector.broadcast %cst_36 : f32 to vector<8x1xf32>
      %46 = arith.mulf %44, %45 : vector<8x1xf32>
      %c0_37 = arith.constant 0 : index
      %c0_38 = arith.constant 0 : index
      %47 = vector.load %arg11[%c0_37, %c0_38] : memref<8x1xf32, #tpu.memory_space<vmem>>, vector<8x1xf32>
      %cst_39 = arith.constant 1.250000e-01 : f32
      %48 = vector.broadcast %cst_39 : f32 to vector<8x1xf32>
      %49 = arith.mulf %47, %48 : vector<8x1xf32>
      %c0_40 = arith.constant 0 : index
      %c0_41 = arith.constant 0 : index
      %50 = vector.load %arg9[%c0_40, %c0_41] : memref<8x1xf32, #tpu.memory_space<vmem>>, vector<8x1xf32>
      %51 = vector.shape_cast %50 : vector<8x1xf32> to vector<1x8x1xf32>
      %cst_42 = arith.constant dense<0.000000e+00> : vector<1xf32>
      %52 = vector.multi_reduction <add>, %51, %cst_42 [1, 2] : vector<1x8x1xf32> to vector<1xf32>
      %53 = vector.shape_cast %52 : vector<1xf32> to vector<1x1x1xf32>
      %54 = vector.extract %53[0, 0, 0] : f32 from vector<1x1x1xf32>
      %cst_43 = arith.constant 2.000000e+00 : f32
      %55 = vector.broadcast %cst_43 : f32 to vector<8x1xf32>
      %56 = arith.mulf %55, %49 : vector<8x1xf32>
      %57 = arith.subf %46, %56 : vector<8x1xf32>
      %58 = arith.mulf %46, %57 : vector<8x1xf32>
      %59 = vector.shape_cast %58 : vector<8x1xf32> to vector<1x8x1xf32>
      %cst_44 = arith.constant dense<0.000000e+00> : vector<1xf32>
      %60 = vector.multi_reduction <add>, %59, %cst_44 [1, 2] : vector<1x8x1xf32> to vector<1xf32>
      %61 = vector.shape_cast %60 : vector<1xf32> to vector<1x1x1xf32>
      %62 = vector.extract %61[0, 0, 0] : f32 from vector<1x1x1xf32>
      %63 = vector.shape_cast %46 : vector<8x1xf32> to vector<1x8x1xf32>
      %cst_45 = arith.constant dense<0.000000e+00> : vector<1xf32>
      %64 = vector.multi_reduction <add>, %63, %cst_45 [1, 2] : vector<1x8x1xf32> to vector<1xf32>
      %65 = vector.shape_cast %64 : vector<1xf32> to vector<1x1x1xf32>
      %66 = vector.extract %65[0, 0, 0] : f32 from vector<1x1x1xf32>
      %67 = vector.shape_cast %49 : vector<8x1xf32> to vector<1x8x1xf32>
      %cst_46 = arith.constant dense<0.000000e+00> : vector<1xf32>
      %68 = vector.multi_reduction <add>, %67, %cst_46 [1, 2] : vector<1x8x1xf32> to vector<1xf32>
      %69 = vector.shape_cast %68 : vector<1xf32> to vector<1x1x1xf32>
      %70 = vector.extract %69[0, 0, 0] : f32 from vector<1x1x1xf32>
      %71 = tpu.iota {dimensions = array<i32: 0>} : vector<8x128xi32>
      %c0_i32_47 = arith.constant 0 : i32
      %72 = vector.broadcast %c0_i32_47 : i32 to vector<8x128xi32>
      %73 = arith.cmpi eq, %71, %72 : vector<8x128xi32>
      %cst_48 = arith.constant 0.000000e+00 : f32
      %74 = vector.broadcast %54 : f32 to vector<8x128xf32>
      %75 = vector.broadcast %cst_48 : f32 to vector<8x128xf32>
      %76 = arith.select %73, %74, %75 : vector<8x128xi1>, vector<8x128xf32>
      %c1_i32 = arith.constant 1 : i32
      %77 = vector.broadcast %c1_i32 : i32 to vector<8x128xi32>
      %78 = arith.cmpi eq, %71, %77 : vector<8x128xi32>
      %cst_49 = arith.constant 0.000000e+00 : f32
      %79 = vector.broadcast %62 : f32 to vector<8x128xf32>
      %80 = vector.broadcast %cst_49 : f32 to vector<8x128xf32>
      %81 = arith.select %78, %79, %80 : vector<8x128xi1>, vector<8x128xf32>
      %82 = arith.addf %76, %81 : vector<8x128xf32>
      %c2_i32 = arith.constant 2 : i32
      %83 = vector.broadcast %c2_i32 : i32 to vector<8x128xi32>
      %84 = arith.cmpi eq, %71, %83 : vector<8x128xi32>
      %cst_50 = arith.constant 0.000000e+00 : f32
      %85 = vector.broadcast %66 : f32 to vector<8x128xf32>
      %86 = vector.broadcast %cst_50 : f32 to vector<8x128xf32>
      %87 = arith.select %84, %85, %86 : vector<8x128xi1>, vector<8x128xf32>
      %88 = arith.addf %82, %87 : vector<8x128xf32>
      %c3_i32 = arith.constant 3 : i32
      %89 = vector.broadcast %c3_i32 : i32 to vector<8x128xi32>
      %90 = arith.cmpi eq, %71, %89 : vector<8x128xi32>
      %cst_51 = arith.constant 0.000000e+00 : f32
      %91 = vector.broadcast %70 : f32 to vector<8x128xf32>
      %92 = vector.broadcast %cst_51 : f32 to vector<8x128xf32>
      %93 = arith.select %90, %91, %92 : vector<8x128xi1>, vector<8x128xf32>
      %94 = arith.addf %88, %93 : vector<8x128xf32>
      %c0_52 = arith.constant 0 : index
      %c0_53 = arith.constant 0 : index
      %c0_54 = arith.constant 0 : index
      %95 = vector.load %arg8[%c0_52, %c0_53, %c0_54] : memref<1x8x128xf32, #tpu.memory_space<vmem>>, vector<1x8x128xf32>
      %96 = vector.shape_cast %95 : vector<1x8x128xf32> to vector<8x128xf32>
      %97 = vector.shape_cast %94 : vector<8x128xf32> to vector<1x8x128xf32>
      tpu.vector_store %arg8[%c0_52, %c0_53, %c0_54], %97 {strides = array<i32>} : memref<1x8x128xf32, #tpu.memory_space<vmem>>, vector<1x8x128xf32>,
    } else {
    }
    return
  }
  func.func @transform_0(%arg0: i32, %arg1: i32) -> (i32, i32) {
    %c0_i32 = arith.constant 0 : i32
    %c0_i32_0 = arith.constant 0 : i32
    return %arg0, %c0_i32 : i32, i32
  }
  func.func @transform_1(%arg0: i32, %arg1: i32) -> (i32, i32) {
    %c0_i32 = arith.constant 0 : i32
    %c0_i32_0 = arith.constant 0 : i32
    return %c0_i32, %arg1 : i32, i32
  }
  func.func @transform_2(%arg0: i32, %arg1: i32) -> (i32, i32) {
    %c0_i32 = arith.constant 0 : i32
    %c0_i32_0 = arith.constant 0 : i32
    return %arg0, %c0_i32 : i32, i32
  }
  func.func @transform_3(%arg0: i32, %arg1: i32) -> (i32, i32) {
    %c0_i32 = arith.constant 0 : i32
    %c0_i32_0 = arith.constant 0 : i32
    return %arg1, %c0_i32 : i32, i32
  }
  func.func @transform_4(%arg0: i32, %arg1: i32) -> (i32, i32) {
    %c0_i32 = arith.constant 0 : i32
    %c0_i32_0 = arith.constant 0 : i32
    return %arg0, %c0_i32 : i32, i32
  }
  func.func @transform_5(%arg0: i32, %arg1: i32) -> (i32, i32) {
    %c0_i32 = arith.constant 0 : i32
    %c0_i32_0 = arith.constant 0 : i32
    return %arg1, %c0_i32 : i32, i32
  }
  func.func @transform_6(%arg0: i32, %arg1: i32) -> (i32, i32, i32) {
    %c0_i32 = arith.constant 0 : i32
    %c0_i32_0 = arith.constant 0 : i32
    %c0_i32_1 = arith.constant 0 : i32
    return %arg0, %c0_i32, %c0_i32_0 : i32, i32, i32
  }
}

</mosaic_0001>

<llo_original>
// kernel: tpu_custom_call.1
$region0: #{tpu_custom_call.1}
  #allocation0 [shape = 'u32[]', space=smem, size = 0x4, offset = 0x4, fixed_abs, tag = 'smem constant byte address 0x4 - core index']
  #allocation1 [shape = 'u32[144,128]{1,0:T(1,128)}', space=vmem, size = 0x12000, scoped, tag = 'internal scratch']
  #allocation2 [shape = 'f32[8,1]{1,0:T(8,128)}', space=vmem, size = 0x1000, scoped, tag = 'scratch operand']
  #allocation3 [shape = 'f32[8,1]{1,0:T(8,128)}', space=vmem, size = 0x1000, scoped, tag = 'scratch operand']
  #allocation4 [shape = 'f32[8,1]{1,0:T(8,128)}', space=vmem, size = 0x1000, scoped, tag = 'scratch operand']
  %s0 = inlined_call_operand.vmem [shape: f32[8,1], index: 0, kind: input, shape index: {}]
  %s1 = inlined_call_operand.hbm [shape: f32[1,8], index: 1, kind: input, shape index: {}]
  %s2 = inlined_call_operand.vmem [shape: f32[8,128], index: 2, kind: input, shape index: {}]
  %s3 = inlined_call_operand.hbm [shape: f32[8,128], index: 3, kind: input, shape index: {}]
  %s4 = inlined_call_operand.vmem [shape: f32[8,128], index: 4, kind: input, shape index: {}]
  %s5 = inlined_call_operand.hbm [shape: f32[8,128], index: 5, kind: input, shape index: {}]
  %s6 = inlined_call_operand.hbm [shape: f32[1,8,128], index: 6, kind: output, shape index: {}]
  %s7 = sld [smem:[#allocation0]]
  $region54: #{tpu_custom_call.1} parent=0
    _
  %s9 = ssub.s32 1, %s7
  %s10 = scalar_select 0, %s9, %s7
  $region1: #{tpu_custom_call.1} parent=0
    #allocation5 [shape = 'u8[512]{0}', space=vmem, size = 0x400, scoped, tag = 'input window, operand 1, single buffered']
    #allocation6 [shape = 's32[1]{0}', space=sflag, size = 0x4, scoped, tag = 'scoped memory for tpu_custom_call.1']
    #allocation7 [shape = 's32[1]{0}', space=sflag, size = 0x4, scoped, tag = 'scoped memory for tpu_custom_call.1']
    #allocation8 [shape = 'u8[4096]{0}', space=vmem, size = 0x1000, scoped, tag = 'input window, operand 3, single buffered']
    #allocation9 [shape = 's32[1]{0}', space=sflag, size = 0x4, scoped, tag = 'scoped memory for tpu_custom_call.1']
    #allocation10 [shape = 'u8[4096]{0}', space=vmem, size = 0x1000, scoped, tag = 'input window, operand 5, single buffered']
    #allocation11 [shape = 'u8[4096]{0}', space=vmem, size = 0x1000, scoped, tag = 'output window, operand 0, single buffered']
    %11 = vsyncpa [#allocation6], 0
    %12 = vsyncpa [#allocation9], 0
    %13 = vsyncpa [#allocation7], 0
    // Predicated region
    $region2: #{tpu_custom_call.1} parent=1 // pred_check
      _
    $region3: #{tpu_custom_call.1} parent=1 // pred_check_branch
      %15 = sbr.rel (0) target = $region5
    $region4: #{tpu_custom_call.1} parent=1 // pred_region
      _
    $region5: #{tpu_custom_call.1} parent=1 // pred_fallthru
      _
    // Predicated region
    $region6: #{tpu_custom_call.1} parent=1 // pred_check
      _
    $region7: #{tpu_custom_call.1} parent=1 // pred_check_branch
      %17 = sbr.rel (0) target = $region9
    $region8: #{tpu_custom_call.1} parent=1 // pred_region
      %s19 = ssub.s32 16, 16
      %20 = vsyncadd [#allocation6], %s19
      %s22 = sshll.u32 [#allocation5], 4
      %s23 = int_to_ptr.vmem [resolvable:$true] %s22
      %25 = dma.hbm_to_vmem [thread:$0]  %s1, 16, %s23, [#allocation6]
    $region9: #{tpu_custom_call.1} parent=1 // pred_fallthru
      _
    // Predicated region
    $region10: #{tpu_custom_call.1} parent=1 // pred_check
      _
    $region11: #{tpu_custom_call.1} parent=1 // pred_check_branch
      %27 = sbr.rel (0) target = $region13
    $region12: #{tpu_custom_call.1} parent=1 // pred_region
      _
    $region13: #{tpu_custom_call.1} parent=1 // pred_fallthru
      _
    // Predicated region
    $region14: #{tpu_custom_call.1} parent=1 // pred_check
      _
    $region15: #{tpu_custom_call.1} parent=1 // pred_check_branch
      %29 = sbr.rel (0) target = $region17
    $region16: #{tpu_custom_call.1} parent=1 // pred_region
      %s31 = ssub.s32 128, 128
      %32 = vsyncadd [#allocation9], %s31
      %s34 = sshll.u32 [#allocation8], 4
      %s35 = int_to_ptr.vmem [resolvable:$true] %s34
      %37 = dma.hbm_to_vmem [thread:$0]  %s3, 128, %s35, [#allocation9]
    $region17: #{tpu_custom_call.1} parent=1 // pred_fallthru
      _
    // Predicated region
    $region18: #{tpu_custom_call.1} parent=1 // pred_check
      _
    $region19: #{tpu_custom_call.1} parent=1 // pred_check_branch
      %39 = sbr.rel (0) target = $region21
    $region20: #{tpu_custom_call.1} parent=1 // pred_region
      _
    $region21: #{tpu_custom_call.1} parent=1 // pred_fallthru
      _
    // Predicated region
    $region22: #{tpu_custom_call.1} parent=1 // pred_check
      _
    $region23: #{tpu_custom_call.1} parent=1 // pred_check_branch
      %41 = sbr.rel (0) target = $region25
    $region24: #{tpu_custom_call.1} parent=1 // pred_region
      %s43 = ssub.s32 128, 128
      %44 = vsyncadd [#allocation9], %s43
      %s46 = sshll.u32 [#allocation10], 4
      %s47 = int_to_ptr.vmem [resolvable:$true] %s46
      %49 = dma.hbm_to_vmem [thread:$0]  %s5, 128, %s47, [#allocation9]
    $region25: #{tpu_custom_call.1} parent=1 // pred_fallthru
      _
    // Predicated region
    $region26: #{tpu_custom_call.1} parent=1 // pred_check
      _
    $region27: #{tpu_custom_call.1} parent=1 // pred_check_branch
      %51 = sbr.rel (0) target = $region29
    $region28: #{tpu_custom_call.1} parent=1 // pred_region
      %52 = dma.done [#allocation6], 16
    $region29: #{tpu_custom_call.1} parent=1 // pred_fallthru
      _
    // Predicated region
    $region30: #{tpu_custom_call.1} parent=1 // pred_check
      _
    $region31: #{tpu_custom_call.1} parent=1 // pred_check_branch
      %54 = sbr.rel (0) target = $region33
    $region32: #{tpu_custom_call.1} parent=1 // pred_region
      %55 = dma.done [#allocation9], 128
    $region33: #{tpu_custom_call.1} parent=1 // pred_fallthru
      _
    // Predicated region
    $region34: #{tpu_custom_call.1} parent=1 // pred_check
      _
    $region35: #{tpu_custom_call.1} parent=1 // pred_check_branch
      %57 = sbr.rel (0) target = $region37
    $region36: #{tpu_custom_call.1} parent=1 // pred_region
      %58 = dma.done [#allocation9], 128
    $region37: #{tpu_custom_call.1} parent=1 // pred_fallthru
      _
    %p59 = scmp.eq.s32.totalorder 0, 0
    // Predicated region
    $region38: #{tpu_custom_call.1} parent=1 // pred_check
      %p60 = pneg %p59
    $region39: #{tpu_custom_call.1} parent=1 // pred_check_branch
      %62 = sbr.rel (%p60) target = $region41
    $region40: #{tpu_custom_call.1} parent=1 // pred_region
      %vm63 = vcmask 7168
      %64 = vst.msk [vmem:[#allocation2] sm:$0xff] %vm63, 0.0
      %65 = vst.msk [vmem:[#allocation3] sm:$0xff] %vm63, 0.0
      %66 = vst.msk [vmem:[#allocation4] sm:$0xff] %vm63, 0.0
    $region41: #{tpu_custom_call.1} parent=1 // pred_fallthru
      _
    %v67 = vld [vmem:[%s2] sm:$0xff]
    %v68 = vld [vmem:[#allocation8] sm:$0xff]
    %69 = vmatprep.subr.mxu0 0.0
    %70 = vmatpush1.xpose.msra.mxu0 0.0
    %71 = vmatprep.subr.mxu0 0.0
    %72 = vmatpush1.xpose.msra.mxu0 0.0
    %73 = vmatprep.subr.mxu0 0.0
    %74 = vmatpush1.xpose.msra.mxu0 0.0
    %75 = vmatprep.subr.mxu0 0.0
    %76 = vmatpush1.xpose.msra.mxu0 0.0
    %77 = vmatprep.subr.mxu0 0.0
    %78 = vmatpush1.xpose.msra.mxu0 0.0
    %79 = vmatprep.subr.mxu0 0.0
    %80 = vmatpush1.xpose.msra.mxu0 0.0
    %81 = vmatprep.subr.mxu0 0.0
    %82 = vmatpush1.xpose.msra.mxu0 0.0
    %83 = vmatprep.subr.mxu0 0.0
    %84 = vmatpush1.xpose.msra.mxu0 0.0
    %85 = vmatprep.subr.mxu0 0.0
    %86 = vmatpush1.xpose.msra.mxu0 0.0
    %87 = vmatprep.subr.mxu0 0.0
    %88 = vmatpush1.xpose.msra.mxu0 0.0
    %89 = vmatprep.subr.mxu0 0.0
    %90 = vmatpush1.xpose.msra.mxu0 0.0
    %91 = vmatprep.subr.mxu0 0.0
    %92 = vmatpush1.xpose.msra.mxu0 0.0
    %93 = vmatprep.subr.mxu0 0.0
    %94 = vmatpush1.xpose.msra.mxu0 0.0
    %95 = vmatprep.subr.mxu0 0.0
    %96 = vmatpush1.xpose.msra.mxu0 0.0
    %97 = vmatprep.subr.mxu0 0.0
    %98 = vmatpush1.xpose.msra.mxu0 0.0
    %99 = vmatprep.subr.mxu0 0.0
    %100 = vmatpush1.xpose.msra.mxu0 %v68
    %101 = vmatprep.subr.mxu0 0.0
    %102 = vmatpush2.xpose.msra.mxu0 0.0
    %103 = vmatprep.subr.mxu0 0.0
    %104 = vmatpush2.xpose.msra.mxu0 0.0
    %105 = vmatprep.subr.mxu0 0.0
    %106 = vmatpush2.xpose.msra.mxu0 0.0
    %107 = vmatprep.subr.mxu0 0.0
    %108 = vmatpush2.xpose.msra.mxu0 0.0
    %109 = vmatprep.subr.mxu0 0.0
    %110 = vmatpush2.xpose.msra.mxu0 0.0
    %111 = vmatprep.subr.mxu0 0.0
    %112 = vmatpush2.xpose.msra.mxu0 0.0
    %113 = vmatprep.subr.mxu0 0.0
    %114 = vmatpush2.xpose.msra.mxu0 0.0
    %115 = vmatprep.subr.mxu0 0.0
    %116 = vmatpush2.xpose.msra.mxu0 0.0
    %117 = vmatprep.subr.mxu0 0.0
    %118 = vmatpush2.xpose.msra.mxu0 0.0
    %119 = vmatprep.subr.mxu0 0.0
    %120 = vmatpush2.xpose.msra.mxu0 0.0
    %121 = vmatprep.subr.mxu0 0.0
    %122 = vmatpush2.xpose.msra.mxu0 0.0
    %123 = vmatprep.subr.mxu0 0.0
    %124 = vmatpush2.xpose.msra.mxu0 0.0
    %125 = vmatprep.subr.mxu0 0.0
    %126 = vmatpush2.xpose.msra.mxu0 0.0
    %127 = vmatprep.subr.mxu0 0.0
    %128 = vmatpush2.xpose.msra.mxu0 0.0
    %129 = vmatprep.subr.mxu0 0.0
    %130 = vmatpush2.xpose.msra.mxu0 0.0
    %131 = vmatprep.subr.mxu0 0.0
    %132 = vmatpush2.xpose.msra.mxu0 0.0
    %133 = vmatprep.mubr.f32.mxu0 0.0
    %134 = vmatmul.mubr.f32.gmra.mxu0 %v67
    %v135 = vpop.f32.mrf.mxu0
    %v136 = vadd.f32 0.0, %v135
    %v137 = vpop.f32.mrf.mxu0
    %138 = vdwg.mxu0
    %v139 = vld [vmem:[%s0] sm:$0xff]
    %v140 = vld [vmem:[#allocation5] sm:$0x1]
    %142 = vset.pattern.permute.xlu0 0
    %143 = vperm.xlu0 %142, %v139
    %v144 = vpop.permute.xlu0 %143
    %v147 = vlaneseq
    %v148 = vshrl.u32 %v147, 7
    %v149 = vsub.s32 0, %v148
    %v150 = vrot.slane %v140, %v149
    %v152 = vadd.f32 %v144, %v150
    %v153 = vmul.f32 %v136, 2.0
    %v154 = vsub.f32 %v152, %v153
    %v155 = vmax.f32 %v154, 0.0
    %v156 = vmul.f32 %v155, -0.02
    %v157 = vmul.f32 %v156, 1.442695
    %v158 = vpow.pop %v157
    %v159 = vld [vmem:[%s4] sm:$0xff]
    %v160 = vld [vmem:[#allocation10] sm:$0xff]
    %161 = vmatprep.subr.mxu0 0.0
    %162 = vmatpush1.xpose.msra.mxu0 0.0
    %163 = vmatprep.subr.mxu0 0.0
    %164 = vmatpush1.xpose.msra.mxu0 0.0
    %165 = vmatprep.subr.mxu0 0.0
    %166 = vmatpush1.xpose.msra.mxu0 0.0
    %167 = vmatprep.subr.mxu0 0.0
    %168 = vmatpush1.xpose.msra.mxu0 0.0
    %169 = vmatprep.subr.mxu0 0.0
    %170 = vmatpush1.xpose.msra.mxu0 0.0
    %171 = vmatprep.subr.mxu0 0.0
    %172 = vmatpush1.xpose.msra.mxu0 0.0
    %173 = vmatprep.subr.mxu0 0.0
    %174 = vmatpush1.xpose.msra.mxu0 0.0
    %175 = vmatprep.subr.mxu0 0.0
    %176 = vmatpush1.xpose.msra.mxu0 0.0
    %177 = vmatprep.subr.mxu0 0.0
    %178 = vmatpush1.xpose.msra.mxu0 0.0
    %179 = vmatprep.subr.mxu0 0.0
    %180 = vmatpush1.xpose.msra.mxu0 0.0
    %181 = vmatprep.subr.mxu0 0.0
    %182 = vmatpush1.xpose.msra.mxu0 0.0
    %183 = vmatprep.subr.mxu0 0.0
    %184 = vmatpush1.xpose.msra.mxu0 0.0
    %185 = vmatprep.subr.mxu0 0.0
    %186 = vmatpush1.xpose.msra.mxu0 0.0
    %187 = vmatprep.subr.mxu0 0.0
    %188 = vmatpush1.xpose.msra.mxu0 0.0
    %189 = vmatprep.subr.mxu0 0.0
    %190 = vmatpush1.xpose.msra.mxu0 0.0
    %191 = vmatprep.subr.mxu0 0.0
    %192 = vmatpush1.xpose.msra.mxu0 %v160
    %193 = vmatprep.subr.mxu0 0.0
    %194 = vmatpush2.xpose.msra.mxu0 0.0
    %195 = vmatprep.subr.mxu0 0.0
    %196 = vmatpush2.xpose.msra.mxu0 0.0
    %197 = vmatprep.subr.mxu0 0.0
    %198 = vmatpush2.xpose.msra.mxu0 0.0
    %199 = vmatprep.subr.mxu0 0.0
    %200 = vmatpush2.xpose.msra.mxu0 0.0
    %201 = vmatprep.subr.mxu0 0.0
    %202 = vmatpush2.xpose.msra.mxu0 0.0
    %203 = vmatprep.subr.mxu0 0.0
    %204 = vmatpush2.xpose.msra.mxu0 0.0
    %205 = vmatprep.subr.mxu0 0.0
    %206 = vmatpush2.xpose.msra.mxu0 0.0
    %207 = vmatprep.subr.mxu0 0.0
    %208 = vmatpush2.xpose.msra.mxu0 0.0
    %209 = vmatprep.subr.mxu0 0.0
    %210 = vmatpush2.xpose.msra.mxu0 0.0
    %211 = vmatprep.subr.mxu0 0.0
    %212 = vmatpush2.xpose.msra.mxu0 0.0
    %213 = vmatprep.subr.mxu0 0.0
    %214 = vmatpush2.xpose.msra.mxu0 0.0
    %215 = vmatprep.subr.mxu0 0.0
    %216 = vmatpush2.xpose.msra.mxu0 0.0
    %217 = vmatprep.subr.mxu0 0.0
    %218 = vmatpush2.xpose.msra.mxu0 0.0
    %219 = vmatprep.subr.mxu0 0.0
    %220 = vmatpush2.xpose.msra.mxu0 0.0
    %221 = vmatprep.subr.mxu0 0.0
    %222 = vmatpush2.xpose.msra.mxu0 0.0
    %223 = vmatprep.subr.mxu0 0.0
    %224 = vmatpush2.xpose.msra.mxu0 0.0
    %225 = vmatprep.mubr.f32.mxu0 0.0
    %226 = vmatmul.mubr.f32.gmra.mxu0 %v159
    %v227 = vpop.f32.mrf.mxu0
    %v228 = vadd.f32 0.0, %v227
    %v229 = vpop.f32.mrf.mxu0
    %230 = vdwg.mxu0
    %v231 = vld [vmem:[#allocation2] sm:$0xff]
    %v232 = vmul.f32 %v228, 2.0
    %v233 = vsub.f32 %v158, %v232
    %v234 = vmul.f32 %v158, %v233
    %vm235 = vcmask 64512
    %v236 = vsel %vm235, %v234, 0.0
    %237 = vadd.xlane.f32.xlu0 %v236
    %v238 = vpop.xlane.xlu0 %237
    %v239 = vadd.f32 %v231, %v238
    %vm240 = vcmask 7168
    %241 = vst.msk [vmem:[#allocation2] sm:$0xff] %vm240, %v239
    %v242 = vld [vmem:[#allocation3] sm:$0xff]
    %v243 = vsel %vm235, %v158, 0.0
    %244 = vadd.xlane.f32.xlu0 %v243
    %v245 = vpop.xlane.xlu0 %244
    %v246 = vadd.f32 %v242, %v245
    %247 = vst.msk [vmem:[#allocation3] sm:$0xff] %vm240, %v246
    %v248 = vld [vmem:[#allocation4] sm:$0xff]
    %v249 = vsel %vm235, %v228, 0.0
    %250 = vadd.xlane.f32.xlu0 %v249
    %v251 = vpop.xlane.xlu0 %250
    %v252 = vadd.f32 %v248, %v251
    %253 = vst.msk [vmem:[#allocation4] sm:$0xff] %vm240, %v252
    // Predicated region
    $region42: #{tpu_custom_call.1} parent=1 // pred_check
      %p254 = pneg %p59
    $region43: #{tpu_custom_call.1} parent=1 // pred_check_branch
      %256 = sbr.rel (%p254) target = $region45
    $region44: #{tpu_custom_call.1} parent=1 // pred_region
      %v257 = vld [vmem:[#allocation3] sm:$0xff]
      %v258 = vmul.f32 %v257, 0.125
      %v259 = vld [vmem:[#allocation4] sm:$0xff]
      %v260 = vmul.f32 %v259, 0.125
      %v261 = vld [vmem:[#allocation2] sm:$0xff]
      %v262 = vsel %vm240, %v261, 0.0
      %263 = vadd.xlane.f32.xlu0 %v262
      %v264 = vpop.xlane.xlu0 %263
      %v265 = vrot.slane %v264, 4
      %v266 = vadd.f32 %v264, %v265
      %v267 = vrot.slane %v266, 2
      %v268 = vadd.f32 %v266, %v267
      %v269 = vrot.slane %v268, 1
      %v270 = vadd.f32 %v268, %v269
      %s271 = vtos %v270
      %v272 = vmul.f32 %v260, 2.0
      %v273 = vsub.f32 %v258, %v272
      %v274 = vmul.f32 %v258, %v273
      %v275 = vsel %vm240, %v274, 0.0
      %276 = vadd.xlane.f32.xlu0 %v275
      %v277 = vpop.xlane.xlu0 %276
      %v278 = vrot.slane %v277, 4
      %v279 = vadd.f32 %v277, %v278
      %v280 = vrot.slane %v279, 2
      %v281 = vadd.f32 %v279, %v280
      %v282 = vrot.slane %v281, 1
      %v283 = vadd.f32 %v281, %v282
      %s284 = vtos %v283
      %v285 = vsel %vm240, %v258, 0.0
      %286 = vadd.xlane.f32.xlu0 %v285
      %v287 = vpop.xlane.xlu0 %286
      %v288 = vrot.slane %v287, 4
      %v289 = vadd.f32 %v287, %v288
      %v290 = vrot.slane %v289, 2
      %v291 = vadd.f32 %v289, %v290
      %v292 = vrot.slane %v291, 1
      %v293 = vadd.f32 %v291, %v292
      %s294 = vtos %v293
      %v295 = vsel %vm240, %v260, 0.0
      %296 = vadd.xlane.f32.xlu0 %v295
      %v297 = vpop.xlane.xlu0 %296
      %v298 = vrot.slane %v297, 4
      %v299 = vadd.f32 %v297, %v298
      %v300 = vrot.slane %v299, 2
      %v301 = vadd.f32 %v299, %v300
      %v302 = vrot.slane %v301, 1
      %v303 = vadd.f32 %v301, %v302
      %s304 = vtos %v303
      %v305 = vlaneseq
      %v306 = vshrl.u32 %v305, 7
      %vm307 = vcmp.eq.s32.totalorder %v306, 0
      %v308 = vstv %s271
      %v309 = vsel %vm307, %v308, 0.0
      %vm310 = vcmp.eq.s32.totalorder %v306, 1
      %v311 = vstv %s284
      %v312 = vsel %vm310, %v311, 0.0
      %v313 = vadd.f32 %v309, %v312
      %vm314 = vcmp.eq.s32.totalorder %v306, 2
      %v315 = vstv %s294
      %v316 = vsel %vm314, %v315, 0.0
      %v317 = vadd.f32 %v313, %v316
      %vm318 = vcmp.eq.s32.totalorder %v306, 3
      %v319 = vstv %s304
      %v320 = vsel %vm318, %v319, 0.0
      %v321 = vadd.f32 %v317, %v320
      %322 = vst [vmem:[#allocation11] sm:$0xff] %v321
    $region45: #{tpu_custom_call.1} parent=1 // pred_fallthru
      _
    // Predicated region
    $region46: #{tpu_custom_call.1} parent=1 // pred_check
      _
    $region47: #{tpu_custom_call.1} parent=1 // pred_check_branch
      %324 = sbr.rel (0) target = $region49
    $region48: #{tpu_custom_call.1} parent=1 // pred_region
      %s326 = ssub.s32 128, 128
      %327 = vsyncadd [#allocation7], %s326
      %s329 = sshll.u32 [#allocation11], 4
      %s330 = int_to_ptr.vmem [resolvable:$true] %s329
      %332 = dma.vmem_to_hbm [thread:$0]  %s330, 128, %s6, [#allocation7]
    $region49: #{tpu_custom_call.1} parent=1 // pred_fallthru
      _
    // Predicated region
    $region50: #{tpu_custom_call.1} parent=1 // pred_check
      _
    $region51: #{tpu_custom_call.1} parent=1 // pred_check_branch
      %334 = sbr.rel (0) target = $region53
    $region52: #{tpu_custom_call.1} parent=1 // pred_region
      %335 = dma.done [#allocation7], 128
    $region53: #{tpu_custom_call.1} parent=1 // pred_fallthru
      _
    %336 = vsyncpa [#allocation6], 1
    %337 = vsyncpa [#allocation9], 1
    %338 = vsyncpa [#allocation7], 1

</llo_original>
